<compile_context>
chip_gen: v7x
topology: tpu7x:2x2x1
jax: 0.10.0
libtpu: 0.0.40
codegen_flags: <defaults>
</compile_context>

<pallas_src>
import math

import numpy as np
import jax
import jax.numpy as jnp
from jax.experimental import pallas as pl
from jax.experimental.pallas import tpu as pltpu

# ---- model config (small, consistent with the module) ----
B = 2          # batch
S = 8          # seq_len
D = 32         # d_model
H = 4          # nhead
HD = D // H    # head_dim
FF = 64        # dim_feedforward
BS = B * S     # flattened rows
HB = H * BS    # head-stacked rows
EPS = 1e-5
NEG = -1e30    # finite mask sentinel (NaN-safe vs -inf)

# ---- parameter-slab layout (one (ROWS, 128) f32 array, 8-row-aligned blocks) ----
LANES = 128
R_WQKV = 0                    # (D, 3D)   qkv weights, columns [Q_all|K_all|V_all], Q pre-scaled
R_WFF1 = R_WQKV + D           # (D, FF)
R_WFF2 = R_WFF1 + D           # (FF, D)
R_WO = R_WFF2 + FF            # (D, D)
R_HMASK = R_WO + D            # (HB, D)   static per-head feature mask (0/1)
R_SBIAS = R_HMASK + HB        # (HB, BS)  static causal & same-batch additive bias (0/NEG)
R_VEC = R_SBIAS + HB          # 8 vector rows: bqkv, bff1, bo, bff2, g1, b1, g2, b2
ROWS = R_VEC + 8              # 296


def transformer_block_kernel(x_ref, mask_ref, p_ref, o_ref):
  f32 = jnp.float32
  x = x_ref[...]                                            # (BS, D)

  # ---- static slices of the packed parameter slab (zero-cost views + loads) ----
  wqkv = p_ref[R_WQKV:R_WQKV + D, 0:3 * D]                  # (D, 3D)
  wff1 = p_ref[R_WFF1:R_WFF1 + D, 0:FF]                     # (D, FF)
  wff2 = p_ref[R_WFF2:R_WFF2 + FF, 0:D]                     # (FF, D)
  wo = p_ref[R_WO:R_WO + D, 0:D]                            # (D, D)
  head_mask = p_ref[R_HMASK:R_HMASK + HB, 0:D]              # (HB, D)
  static_bias = p_ref[R_SBIAS:R_SBIAS + HB, 0:BS]           # (HB, BS)
  bqkv = p_ref[R_VEC + 0:R_VEC + 1, 0:3 * D]                # (1, 3D)
  bff1 = p_ref[R_VEC + 1:R_VEC + 2, 0:FF]
  bo = p_ref[R_VEC + 2:R_VEC + 3, 0:D]
  bff2 = p_ref[R_VEC + 3:R_VEC + 4, 0:D]
  g1 = p_ref[R_VEC + 4:R_VEC + 5, 0:D]
  b1 = p_ref[R_VEC + 5:R_VEC + 6, 0:D]
  g2 = p_ref[R_VEC + 6:R_VEC + 7, 0:D]
  b2 = p_ref[R_VEC + 7:R_VEC + 8, 0:D]

  # ---- QKV projection: one MXU launch; Q columns carry the 1/sqrt(HD) fold ----
  qkv = jnp.dot(x, wqkv, preferred_element_type=f32) + bqkv  # (BS, 3D)
  q = qkv[:, 0:D]                                            # (BS, D), pre-scaled
  k = qkv[:, D:2 * D]                                        # (BS, D)
  v = qkv[:, 2 * D:3 * D]                                    # (BS, D)

  # ---- all heads at once: stack per-head queries along sublanes, mask other
  #      heads' feature columns, then ONE matmul gives every head's scores. ----
  qhat = jnp.concatenate([q] * H, axis=0) * head_mask        # (HB, D)
  s = jax.lax.dot_general(qhat, k, (((1,), (1,)), ((), ())),
                          preferred_element_type=f32)        # (HB, BS)

  # static (causal & same-batch) bias + runtime key-padding bias, both additive
  key_bias = jnp.where(mask_ref[...] > 0, f32(0.0), f32(NEG))  # (1, BS)
  s = s + static_bias + key_bias

  # ---- per-row softmax (each row is one (query, head) pair) ----
  m = jnp.max(s, axis=-1, keepdims=True)
  p = jnp.exp(s - m)
  inv_l = pl.reciprocal(jnp.sum(p, axis=-1, keepdims=True), approx=False)
  w = p * inv_l                                              # (HB, BS)

  # ---- P @ V for all heads in one matmul; mask + fold head blocks back ----
  ctx_all = jnp.dot(w, v, preferred_element_type=f32) * head_mask   # (HB, D)
  ctx = (ctx_all[0 * BS:1 * BS] + ctx_all[1 * BS:2 * BS]
         + ctx_all[2 * BS:3 * BS] + ctx_all[3 * BS:4 * BS])          # (BS, D)

  # ---- single output projection ----
  attn_out = jnp.dot(ctx, wo, preferred_element_type=f32) + bo      # (BS, D)

  def layernorm(h, g, b):
    mu = jnp.mean(h, axis=-1, keepdims=True)
    var = jnp.mean((h - mu) * (h - mu), axis=-1, keepdims=True)
    return (h - mu) * jax.lax.rsqrt(var + EPS) * g + b

  # ---- residual + post-attention LayerNorm ----
  x1 = layernorm(x + attn_out, g1, b1)

  # ---- feed-forward: Linear -> ReLU -> Linear ----
  ff = jnp.maximum(jnp.dot(x1, wff1, preferred_element_type=f32) + bff1, 0.0)
  ff = jnp.dot(ff, wff2, preferred_element_type=f32) + bff2

  # ---- residual + post-FF LayerNorm, single store ----
  o_ref[...] = layernorm(x1 + ff, g2, b2)


def pack_params(params):
  """ONE-TIME packing of all parameters + static masks into a single f32 slab.

  Done outside the per-call path (review item 1): QKV column permutation to
  [Q_allheads | K_allheads | V_allheads], 1/sqrt(HD) folded into the Q columns,
  and the static per-head / causal / same-batch masks baked in as constants.
  """
  # column permutation: PyTorch interleaved per-head [q|k|v] -> [Q_all|K_all|V_all]
  perm = np.concatenate([np.arange(HD) + h * 3 * HD + part * HD
                         for part in range(3) for h in range(H)])
  col_scale = np.concatenate([np.full(D, 1.0 / math.sqrt(HD), np.float32),
                              np.ones(2 * D, np.float32)])
  wqkv = params["wqkv"][:, perm] * col_scale
  bqkv = params["bqkv"][:, perm] * col_scale

  # static per-head feature mask: row block h keeps feature columns of head h
  r = np.arange(HB)
  head_mask = (r[:, None] // BS == np.arange(D)[None, :] // HD).astype(np.float32)

  # static causal & same-batch additive bias over flattened query/key indices
  qidx = r % BS
  n = np.arange(BS)
  valid = (qidx[:, None] // S == n[None, :] // S) & (qidx[:, None] >= n[None, :])
  static_bias = np.where(valid, 0.0, NEG).astype(np.float32)

  slab = jnp.zeros((ROWS, LANES), jnp.float32)
  slab = slab.at[R_WQKV:R_WQKV + D, 0:3 * D].set(wqkv)
  slab = slab.at[R_WFF1:R_WFF1 + D, 0:FF].set(params["wff1"])
  slab = slab.at[R_WFF2:R_WFF2 + FF, 0:D].set(params["wff2"])
  slab = slab.at[R_WO:R_WO + D, 0:D].set(params["wo"])
  slab = slab.at[R_HMASK:R_HMASK + HB, 0:D].set(head_mask)
  slab = slab.at[R_SBIAS:R_SBIAS + HB, 0:BS].set(static_bias)
  slab = slab.at[R_VEC + 0, 0:3 * D].set(bqkv[0])
  slab = slab.at[R_VEC + 1, 0:FF].set(params["bff1"][0])
  slab = slab.at[R_VEC + 2, 0:D].set(params["bo"][0])
  slab = slab.at[R_VEC + 3, 0:D].set(params["bff2"][0])
  slab = slab.at[R_VEC + 4, 0:D].set(params["g1"][0])
  slab = slab.at[R_VEC + 5, 0:D].set(params["b1"][0])
  slab = slab.at[R_VEC + 6, 0:D].set(params["g2"][0])
  slab = slab.at[R_VEC + 7, 0:D].set(params["b2"][0])
  return slab


@jax.jit
def transformer_block(x, attention_mask, pslab):
  """x: (B, S, D) f32; attention_mask: (B, S) int (1=valid, 0=pad); pslab: packed params."""
  x2d = x.reshape(BS, D)
  mask2d = attention_mask.reshape(1, BS).astype(jnp.int32)
  out2d = pl.pallas_call(
      transformer_block_kernel,
      out_shape=jax.ShapeDtypeStruct((BS, D), jnp.float32),
      in_specs=[pl.BlockSpec(memory_space=pltpu.MemorySpace.VMEM)] * 3,
      out_specs=pl.BlockSpec(memory_space=pltpu.MemorySpace.VMEM),
  )(x2d, mask2d, pslab)
  return out2d.reshape(B, S, D)


def init_params(key):
  ks = jax.random.split(key, 8)
  s = 0.05
  return {
      # nn.Linear weights are (out, in); stored pre-transposed as (in, out).
      "wqkv": jax.random.normal(ks[0], (D, 3 * D), jnp.float32) * s,
      "bqkv": jax.random.normal(ks[1], (1, 3 * D), jnp.float32) * s,
      "wo":   jax.random.normal(ks[2], (D, D), jnp.float32) * s,
      "bo":   jax.random.normal(ks[3], (1, D), jnp.float32) * s,
      "g1":   jnp.ones((1, D), jnp.float32),
      "b1":   jnp.zeros((1, D), jnp.float32),
      "wff1": jax.random.normal(ks[4], (D, FF), jnp.float32) * s,
      "bff1": jax.random.normal(ks[5], (1, FF), jnp.float32) * s,
      "wff2": jax.random.normal(ks[6], (FF, D), jnp.float32) * s,
      "bff2": jax.random.normal(ks[7], (1, D), jnp.float32) * s,
      "g2":   jnp.ones((1, D), jnp.float32),
      "b2":   jnp.zeros((1, D), jnp.float32),
  }


def reference_forward(x, attention_mask, p):
  """Pure-JAX reference mirroring the PyTorch module (eval mode)."""
  qkv = x @ p["wqkv"] + p["bqkv"]                       # (B, S, 3D)
  qkv = qkv.reshape(B, S, H, 3 * HD).transpose(0, 2, 1, 3)
  q, k, v = jnp.split(qkv, 3, axis=-1)                  # (B, H, S, HD)
  scores = jnp.einsum("bhqd,bhkd->bhqk", q, k) / math.sqrt(HD)
  causal = jnp.tril(jnp.ones((S, S), bool))[None, None]
  padm = (attention_mask[:, None, None, :] > 0)
  scores = jnp.where(causal & padm, scores, -jnp.inf)
  w = jax.nn.softmax(scores, axis=-1)
  vals = jnp.einsum("bhqk,bhkd->bhqd", w, v).transpose(0, 2, 1, 3).reshape(B, S, D)
  attn_out = vals @ p["wo"] + p["bo"]

  def ln(h, g, b):
    mu = h.mean(-1, keepdims=True)
    var = ((h - mu) ** 2).mean(-1, keepdims=True)
    return (h - mu) / jnp.sqrt(var + EPS) * g + b

  x1 = ln(x + attn_out, p["g1"], p["b1"])
  ff = jnp.maximum(x1 @ p["wff1"] + p["bff1"], 0.0) @ p["wff2"] + p["bff2"]
  return ln(x1 + ff, p["g2"], p["b2"])


if __name__ == "__main__":
  key = jax.random.PRNGKey(0)
  kx, kp = jax.random.split(key)

  x = jax.random.normal(kx, (B, S, D), jnp.float32)
  # 1 = valid token, 0 = padding (batch 0 has 2 padded positions).
  attention_mask = jnp.array(
      [[1, 1, 1, 1, 1, 1, 0, 0],
       [1, 1, 1, 1, 1, 1, 1, 1]], dtype=jnp.int32)

  params = init_params(kp)
  pslab = pack_params(params)          # one-time weight re-layout / packing

  out = transformer_block(x, attention_mask, pslab)
  out = jax.block_until_ready(out)

  ref = reference_forward(x, attention_mask, params)
  assert out.shape == (B, S, D)
  assert jnp.allclose(out, ref, atol=1e-3, rtol=1e-3), "mismatch vs reference"

  print("KERNEL_OK")
</pallas_src>

<mosaic_0001>
module attributes {stable_mosaic.version = 11 : i64} {
  func.func @transformer_block_kernel(%arg0: memref<16x32xf32, #tpu.memory_space<vmem>>, %arg1: memref<1x16xi32, #tpu.memory_space<vmem>>, %arg2: memref<296x128xf32, #tpu.memory_space<vmem>>, %arg3: memref<16x32xf32, #tpu.memory_space<vmem>>) attributes {dimension_semantics = [], scalar_prefetch = 0 : i64, scratch_operands = 0 : i64, tpu.core_type = #tpu.core_type<tc>} {
    %c0 = arith.constant 0 : index
    %c0_0 = arith.constant 0 : index
    %0 = vector.load %arg0[%c0, %c0_0] : memref<16x32xf32, #tpu.memory_space<vmem>>, vector<16x32xf32>
    %c0_1 = arith.constant 0 : index
    %c0_2 = arith.constant 0 : index
    %1 = vector.load %arg2[%c0_1, %c0_2] : memref<296x128xf32, #tpu.memory_space<vmem>>, vector<32x96xf32>
    %c32 = arith.constant 32 : index
    %c0_3 = arith.constant 0 : index
    %2 = vector.load %arg2[%c32, %c0_3] : memref<296x128xf32, #tpu.memory_space<vmem>>, vector<32x64xf32>
    %c64 = arith.constant 64 : index
    %c0_4 = arith.constant 0 : index
    %3 = vector.load %arg2[%c64, %c0_4] : memref<296x128xf32, #tpu.memory_space<vmem>>, vector<64x32xf32>
    %c128 = arith.constant 128 : index
    %c0_5 = arith.constant 0 : index
    %4 = vector.load %arg2[%c128, %c0_5] : memref<296x128xf32, #tpu.memory_space<vmem>>, vector<32x32xf32>
    %c160 = arith.constant 160 : index
    %c0_6 = arith.constant 0 : index
    %5 = vector.load %arg2[%c160, %c0_6] : memref<296x128xf32, #tpu.memory_space<vmem>>, vector<64x32xf32>
    %c224 = arith.constant 224 : index
    %c0_7 = arith.constant 0 : index
    %6 = vector.load %arg2[%c224, %c0_7] : memref<296x128xf32, #tpu.memory_space<vmem>>, vector<64x16xf32>
    %c288 = arith.constant 288 : index
    %c0_8 = arith.constant 0 : index
    %7 = vector.load %arg2[%c288, %c0_8] : memref<296x128xf32, #tpu.memory_space<vmem>>, vector<1x96xf32>
    %c289 = arith.constant 289 : index
    %c0_9 = arith.constant 0 : index
    %8 = vector.load %arg2[%c289, %c0_9] : memref<296x128xf32, #tpu.memory_space<vmem>>, vector<1x64xf32>
    %c290 = arith.constant 290 : index
    %c0_10 = arith.constant 0 : index
    %9 = vector.load %arg2[%c290, %c0_10] : memref<296x128xf32, #tpu.memory_space<vmem>>, vector<1x32xf32>
    %c291 = arith.constant 291 : index
    %c0_11 = arith.constant 0 : index
    %10 = vector.load %arg2[%c291, %c0_11] : memref<296x128xf32, #tpu.memory_space<vmem>>, vector<1x32xf32>
    %c292 = arith.constant 292 : index
    %c0_12 = arith.constant 0 : index
    %11 = vector.load %arg2[%c292, %c0_12] : memref<296x128xf32, #tpu.memory_space<vmem>>, vector<1x32xf32>
    %c293 = arith.constant 293 : index
    %c0_13 = arith.constant 0 : index
    %12 = vector.load %arg2[%c293, %c0_13] : memref<296x128xf32, #tpu.memory_space<vmem>>, vector<1x32xf32>
    %c294 = arith.constant 294 : index
    %c0_14 = arith.constant 0 : index
    %13 = vector.load %arg2[%c294, %c0_14] : memref<296x128xf32, #tpu.memory_space<vmem>>, vector<1x32xf32>
    %c295 = arith.constant 295 : index
    %c0_15 = arith.constant 0 : index
    %14 = vector.load %arg2[%c295, %c0_15] : memref<296x128xf32, #tpu.memory_space<vmem>>, vector<1x32xf32>
    %cst = arith.constant dense<0.000000e+00> : vector<16x96xf32>
    %15 = tpu.matmul %0, %1, %cst {dimension_numbers = #tpu.dot_dimension_numbers<[1], [0], [0], [1], [0, 0, 1, 1], [], []>} : vector<16x32xf32>, vector<32x96xf32>, vector<16x96xf32> -> vector<16x96xf32>
    %16 = vector.broadcast %7 : vector<1x96xf32> to vector<16x96xf32>
    %17 = arith.addf %15, %16 : vector<16x96xf32>
    %18 = vector.extract_strided_slice %17 {offsets = [0, 0], sizes = [16, 32], strides = [1, 1]} : vector<16x96xf32> to vector<16x32xf32>
    %19 = vector.extract_strided_slice %17 {offsets = [0, 32], sizes = [16, 32], strides = [1, 1]} : vector<16x96xf32> to vector<16x32xf32>
    %20 = vector.extract_strided_slice %17 {offsets = [0, 64], sizes = [16, 32], strides = [1, 1]} : vector<16x96xf32> to vector<16x32xf32>
    %21 = tpu.concatenate %18, %18, %18, %18 in 0 : vector<16x32xf32>, vector<16x32xf32>, vector<16x32xf32>, vector<16x32xf32> -> vector<64x32xf32>
    %22 = arith.mulf %21, %5 : vector<64x32xf32>
    %cst_16 = arith.constant dense<0.000000e+00> : vector<64x16xf32>
    %23 = tpu.matmul %22, %19, %cst_16 {dimension_numbers = #tpu.dot_dimension_numbers<[1], [1], [0], [0], [0, 0, 1, 0], [], []>} : vector<64x32xf32>, vector<16x32xf32>, vector<64x16xf32> -> vector<64x16xf32>
    %c0_17 = arith.constant 0 : index
    %c0_18 = arith.constant 0 : index
    %24 = vector.load %arg1[%c0_17, %c0_18] : memref<1x16xi32, #tpu.memory_space<vmem>>, vector<1x16xi32>
    %c0_i32 = arith.constant 0 : i32
    %25 = vector.broadcast %c0_i32 : i32 to vector<1x16xi32>
    %26 = arith.cmpi sgt, %24, %25 : vector<1x16xi32>
    %cst_19 = arith.constant 0.000000e+00 : f32
    %cst_20 = arith.constant -1.000000e+30 : f32
    %27 = vector.broadcast %cst_19 : f32 to vector<1x16xf32>
    %28 = vector.broadcast %cst_20 : f32 to vector<1x16xf32>
    %29 = arith.select %26, %27, %28 : vector<1x16xi1>, vector<1x16xf32>
    %30 = arith.addf %23, %6 : vector<64x16xf32>
    %31 = vector.broadcast %29 : vector<1x16xf32> to vector<64x16xf32>
    %32 = arith.addf %30, %31 : vector<64x16xf32>
    %cst_21 = arith.constant dense<0xFF800000> : vector<64xf32>
    %33 = vector.multi_reduction <maximumf>, %32, %cst_21 [1] : vector<64x16xf32> to vector<64xf32>
    %34 = vector.shape_cast %33 : vector<64xf32> to vector<64x1xf32>
    %35 = vector.broadcast %34 : vector<64x1xf32> to vector<64x16xf32>
    %36 = arith.subf %32, %35 : vector<64x16xf32>
    %37 = math.exp %36 : vector<64x16xf32>
    %cst_22 = arith.constant dense<0.000000e+00> : vector<64xf32>
    %38 = vector.multi_reduction <add>, %37, %cst_22 [1] : vector<64x16xf32> to vector<64xf32>
    %39 = vector.shape_cast %38 : vector<64xf32> to vector<64x1xf32>
    %40 = tpu.reciprocal %39 : vector<64x1xf32> -> vector<64x1xf32>
    %41 = vector.broadcast %40 : vector<64x1xf32> to vector<64x16xf32>
    %42 = arith.mulf %37, %41 : vector<64x16xf32>
    %cst_23 = arith.constant dense<0.000000e+00> : vector<64x32xf32>
    %43 = tpu.matmul %42, %20, %cst_23 {dimension_numbers = #tpu.dot_dimension_numbers<[1], [0], [0], [1], [0, 0, 1, 1], [], []>} : vector<64x16xf32>, vector<16x32xf32>, vector<64x32xf32> -> vector<64x32xf32>
    %44 = arith.mulf %43, %5 : vector<64x32xf32>
    %45 = vector.extract_strided_slice %44 {offsets = [0, 0], sizes = [16, 32], strides = [1, 1]} : vector<64x32xf32> to vector<16x32xf32>
    %46 = vector.extract_strided_slice %44 {offsets = [16, 0], sizes = [16, 32], strides = [1, 1]} : vector<64x32xf32> to vector<16x32xf32>
    %47 = arith.addf %45, %46 : vector<16x32xf32>
    %48 = vector.extract_strided_slice %44 {offsets = [32, 0], sizes = [16, 32], strides = [1, 1]} : vector<64x32xf32> to vector<16x32xf32>
    %49 = arith.addf %47, %48 : vector<16x32xf32>
    %50 = vector.extract_strided_slice %44 {offsets = [48, 0], sizes = [16, 32], strides = [1, 1]} : vector<64x32xf32> to vector<16x32xf32>
    %51 = arith.addf %49, %50 : vector<16x32xf32>
    %cst_24 = arith.constant dense<0.000000e+00> : vector<16x32xf32>
    %52 = tpu.matmul %51, %4, %cst_24 {dimension_numbers = #tpu.dot_dimension_numbers<[1], [0], [0], [1], [0, 0, 1, 1], [], []>} : vector<16x32xf32>, vector<32x32xf32>, vector<16x32xf32> -> vector<16x32xf32>
    %53 = vector.broadcast %9 : vector<1x32xf32> to vector<16x32xf32>
    %54 = arith.addf %52, %53 : vector<16x32xf32>
    %55 = arith.addf %0, %54 : vector<16x32xf32>
    %cst_25 = arith.constant dense<0.000000e+00> : vector<16xf32>
    %56 = vector.multi_reduction <add>, %55, %cst_25 [1] : vector<16x32xf32> to vector<16xf32>
    %57 = vector.shape_cast %56 : vector<16xf32> to vector<16x1xf32>
    %cst_26 = arith.constant 3.200000e+01 : f32
    %58 = vector.broadcast %cst_26 : f32 to vector<16x1xf32>
    %59 = arith.divf %57, %58 : vector<16x1xf32>
    %60 = vector.broadcast %59 : vector<16x1xf32> to vector<16x32xf32>
    %61 = arith.subf %55, %60 : vector<16x32xf32>
    %62 = vector.broadcast %59 : vector<16x1xf32> to vector<16x32xf32>
    %63 = arith.subf %55, %62 : vector<16x32xf32>
    %64 = arith.mulf %61, %63 : vector<16x32xf32>
    %cst_27 = arith.constant dense<0.000000e+00> : vector<16xf32>
    %65 = vector.multi_reduction <add>, %64, %cst_27 [1] : vector<16x32xf32> to vector<16xf32>
    %66 = vector.shape_cast %65 : vector<16xf32> to vector<16x1xf32>
    %cst_28 = arith.constant 3.200000e+01 : f32
    %67 = vector.broadcast %cst_28 : f32 to vector<16x1xf32>
    %68 = arith.divf %66, %67 : vector<16x1xf32>
    %69 = vector.broadcast %59 : vector<16x1xf32> to vector<16x32xf32>
    %70 = arith.subf %55, %69 : vector<16x32xf32>
    %cst_29 = arith.constant 9.99999974E-6 : f32
    %71 = vector.broadcast %cst_29 : f32 to vector<16x1xf32>
    %72 = arith.addf %68, %71 : vector<16x1xf32>
    %73 = math.rsqrt %72 : vector<16x1xf32>
    %74 = vector.broadcast %73 : vector<16x1xf32> to vector<16x32xf32>
    %75 = arith.mulf %70, %74 : vector<16x32xf32>
    %76 = vector.broadcast %11 : vector<1x32xf32> to vector<16x32xf32>
    %77 = arith.mulf %75, %76 : vector<16x32xf32>
    %78 = vector.broadcast %12 : vector<1x32xf32> to vector<16x32xf32>
    %79 = arith.addf %77, %78 : vector<16x32xf32>
    %cst_30 = arith.constant dense<0.000000e+00> : vector<16x64xf32>
    %80 = tpu.matmul %79, %2, %cst_30 {dimension_numbers = #tpu.dot_dimension_numbers<[1], [0], [0], [1], [0, 0, 1, 1], [], []>} : vector<16x32xf32>, vector<32x64xf32>, vector<16x64xf32> -> vector<16x64xf32>
    %81 = vector.broadcast %8 : vector<1x64xf32> to vector<16x64xf32>
    %82 = arith.addf %80, %81 : vector<16x64xf32>
    %cst_31 = arith.constant 0.000000e+00 : f32
    %83 = vector.broadcast %cst_31 : f32 to vector<16x64xf32>
    %84 = arith.maximumf %82, %83 : vector<16x64xf32>
    %cst_32 = arith.constant dense<0.000000e+00> : vector<16x32xf32>
    %85 = tpu.matmul %84, %3, %cst_32 {dimension_numbers = #tpu.dot_dimension_numbers<[1], [0], [0], [1], [0, 0, 1, 1], [], []>} : vector<16x64xf32>, vector<64x32xf32>, vector<16x32xf32> -> vector<16x32xf32>
    %86 = vector.broadcast %10 : vector<1x32xf32> to vector<16x32xf32>
    %87 = arith.addf %85, %86 : vector<16x32xf32>
    %88 = arith.addf %79, %87 : vector<16x32xf32>
    %cst_33 = arith.constant dense<0.000000e+00> : vector<16xf32>
    %89 = vector.multi_reduction <add>, %88, %cst_33 [1] : vector<16x32xf32> to vector<16xf32>
    %90 = vector.shape_cast %89 : vector<16xf32> to vector<16x1xf32>
    %cst_34 = arith.constant 3.200000e+01 : f32
    %91 = vector.broadcast %cst_34 : f32 to vector<16x1xf32>
    %92 = arith.divf %90, %91 : vector<16x1xf32>
    %93 = vector.broadcast %92 : vector<16x1xf32> to vector<16x32xf32>
    %94 = arith.subf %88, %93 : vector<16x32xf32>
    %95 = vector.broadcast %92 : vector<16x1xf32> to vector<16x32xf32>
    %96 = arith.subf %88, %95 : vector<16x32xf32>
    %97 = arith.mulf %94, %96 : vector<16x32xf32>
    %cst_35 = arith.constant dense<0.000000e+00> : vector<16xf32>
    %98 = vector.multi_reduction <add>, %97, %cst_35 [1] : vector<16x32xf32> to vector<16xf32>
    %99 = vector.shape_cast %98 : vector<16xf32> to vector<16x1xf32>
    %cst_36 = arith.constant 3.200000e+01 : f32
    %100 = vector.broadcast %cst_36 : f32 to vector<16x1xf32>
    %101 = arith.divf %99, %100 : vector<16x1xf32>
    %102 = vector.broadcast %92 : vector<16x1xf32> to vector<16x32xf32>
    %103 = arith.subf %88, %102 : vector<16x32xf32>
    %cst_37 = arith.constant 9.99999974E-6 : f32
    %104 = vector.broadcast %cst_37 : f32 to vector<16x1xf32>
    %105 = arith.addf %101, %104 : vector<16x1xf32>
    %106 = math.rsqrt %105 : vector<16x1xf32>
    %107 = vector.broadcast %106 : vector<16x1xf32> to vector<16x32xf32>
    %108 = arith.mulf %103, %107 : vector<16x32xf32>
    %109 = vector.broadcast %13 : vector<1x32xf32> to vector<16x32xf32>
    %110 = arith.mulf %108, %109 : vector<16x32xf32>
    %111 = vector.broadcast %14 : vector<1x32xf32> to vector<16x32xf32>
    %112 = arith.addf %110, %111 : vector<16x32xf32>
    %c0_38 = arith.constant 0 : index
    %c0_39 = arith.constant 0 : index
    %113 = vector.load %arg3[%c0_38, %c0_39] : memref<16x32xf32, #tpu.memory_space<vmem>>, vector<16x32xf32>
    tpu.vector_store %arg3[%c0_38, %c0_39], %112 {strides = array<i32>} : memref<16x32xf32, #tpu.memory_space<vmem>>, vector<16x32xf32>,
    return
  }
}

</mosaic_0001>

<llo_original>
// kernel: transformer_block.1
$region0: #{transformer_block.1}
  #allocation0 [shape = 'u32[]', space=smem, size = 0x4, offset = 0x4, fixed_abs, tag = 'smem constant byte address 0x4 - core index']
  #allocation1 [shape = 'u32[144,128]{1,0:T(1,128)}', space=vmem, size = 0x12000, scoped, tag = 'internal scratch']
  %s0 = inlined_call_operand.hbm [shape: f32[16,32], index: 0, kind: input, shape index: {}]
  %s1 = inlined_call_operand.vmem [shape: s32[1,16], index: 1, kind: input, shape index: {}]
  %s2 = inlined_call_operand.hbm [shape: f32[296,128], index: 2, kind: input, shape index: {}]
  %s3 = inlined_call_operand.hbm [shape: f32[16,32], index: 3, kind: output, shape index: {}]
  %s4 = sld [smem:[#allocation0]]
  $region30: #{transformer_block.1} parent=0
    _
  %s6 = ssub.s32 1, %s4
  %s7 = scalar_select 0, %s6, %s4
  $region1: #{transformer_block.1} parent=0
    #allocation2 [shape = 'u8[8192]{0}', space=vmem, size = 0x2000, scoped, tag = 'input window, operand 0, single buffered']
    #allocation3 [shape = 's32[1]{0}', space=sflag, size = 0x4, scoped, tag = 'scoped memory for transformer_block.1']
    #allocation4 [shape = 's32[1]{0}', space=sflag, size = 0x4, scoped, tag = 'scoped memory for transformer_block.1']
    #allocation5 [shape = 'u8[151552]{0}', space=vmem, size = 0x25000, scoped, tag = 'input window, operand 2, single buffered']
    #allocation6 [shape = 's32[1]{0}', space=sflag, size = 0x4, scoped, tag = 'scoped memory for transformer_block.1']
    #allocation7 [shape = 'u8[8192]{0}', space=vmem, size = 0x2000, scoped, tag = 'output window, operand 0, single buffered']
    %8 = vsyncpa [#allocation3], 0
    %9 = vsyncpa [#allocation6], 0
    %10 = vsyncpa [#allocation4], 0
    // Predicated region
    $region2: #{transformer_block.1} parent=1 // pred_check
      _
    $region3: #{transformer_block.1} parent=1 // pred_check_branch
      %12 = sbr.rel (0) target = $region5
    $region4: #{transformer_block.1} parent=1 // pred_region
      %s14 = ssub.s32 256, 256
      %15 = vsyncadd [#allocation3], %s14
      %s16 = sshll.u32 [#allocation2], 4
      %s17 = int_to_ptr.vmem [resolvable:$true] %s16
      %22 = dma.hbm_to_vmem [thread:$0]  %s0, 256, %s17, [#allocation3], 128, 128, 8
    $region5: #{transformer_block.1} parent=1 // pred_fallthru
      _
    // Predicated region
    $region6: #{transformer_block.1} parent=1 // pred_check
      _
    $region7: #{transformer_block.1} parent=1 // pred_check_branch
      %24 = sbr.rel (0) target = $region9
    $region8: #{transformer_block.1} parent=1 // pred_region
      _
    $region9: #{transformer_block.1} parent=1 // pred_fallthru
      _
    // Predicated region
    $region10: #{transformer_block.1} parent=1 // pred_check
      _
    $region11: #{transformer_block.1} parent=1 // pred_check_branch
      %26 = sbr.rel (0) target = $region13
    $region12: #{transformer_block.1} parent=1 // pred_region
      %s28 = ssub.s32 4736, 4736
      %29 = vsyncadd [#allocation6], %s28
      %s30 = sshll.u32 [#allocation5], 4
      %s31 = int_to_ptr.vmem [resolvable:$true] %s30
      %36 = dma.hbm_to_vmem [thread:$0]  %s2, 4736, %s31, [#allocation6], 128, 128, 8
    $region13: #{transformer_block.1} parent=1 // pred_fallthru
      _
    // Predicated region
    $region14: #{transformer_block.1} parent=1 // pred_check
      _
    $region15: #{transformer_block.1} parent=1 // pred_check_branch
      %38 = sbr.rel (0) target = $region17
    $region16: #{transformer_block.1} parent=1 // pred_region
      %39 = dma.done [#allocation3], 256
    $region17: #{transformer_block.1} parent=1 // pred_fallthru
      _
    // Predicated region
    $region18: #{transformer_block.1} parent=1 // pred_check
      _
    $region19: #{transformer_block.1} parent=1 // pred_check_branch
      %41 = sbr.rel (0) target = $region21
    $region20: #{transformer_block.1} parent=1 // pred_region
      %42 = dma.done [#allocation6], 4736
    $region21: #{transformer_block.1} parent=1 // pred_fallthru
      _
    %v43 = vld [vmem:[#allocation2] sm:$0xff]
    %v44 = vld [vmem:[#allocation2 + $0x8] sm:$0xff]
    %v45 = vld [vmem:[#allocation5] sm:$0xff]
    %v46 = vld [vmem:[#allocation5 + $0x8] sm:$0xff]
    %v47 = vld [vmem:[#allocation5 + $0x10] sm:$0xff]
    %v48 = vld [vmem:[#allocation5 + $0x18] sm:$0xff]
    %v49 = vld [vmem:[#allocation5 + $0x20] sm:$0xff]
    %v50 = vld [vmem:[#allocation5 + $0x28] sm:$0xff]
    %v51 = vld [vmem:[#allocation5 + $0x30] sm:$0xff]
    %v52 = vld [vmem:[#allocation5 + $0x38] sm:$0xff]
    %v53 = vld [vmem:[#allocation5 + $0x40] sm:$0xff]
    %v54 = vld [vmem:[#allocation5 + $0x48] sm:$0xff]
    %v55 = vld [vmem:[#allocation5 + $0x50] sm:$0xff]
    %v56 = vld [vmem:[#allocation5 + $0x58] sm:$0xff]
    %v57 = vld [vmem:[#allocation5 + $0x60] sm:$0xff]
    %v58 = vld [vmem:[#allocation5 + $0x68] sm:$0xff]
    %v59 = vld [vmem:[#allocation5 + $0x70] sm:$0xff]
    %v60 = vld [vmem:[#allocation5 + $0x78] sm:$0xff]
    %v61 = vld [vmem:[#allocation5 + $0x80] sm:$0xff]
    %v62 = vld [vmem:[#allocation5 + $0x88] sm:$0xff]
    %v63 = vld [vmem:[#allocation5 + $0x90] sm:$0xff]
    %v64 = vld [vmem:[#allocation5 + $0x98] sm:$0xff]
    %v65 = vld [vmem:[#allocation5 + $0xa0] sm:$0xff]
    %v66 = vld [vmem:[#allocation5 + $0xa8] sm:$0xff]
    %v67 = vld [vmem:[#allocation5 + $0xb0] sm:$0xff]
    %v68 = vld [vmem:[#allocation5 + $0xb8] sm:$0xff]
    %v69 = vld [vmem:[#allocation5 + $0xc0] sm:$0xff]
    %v70 = vld [vmem:[#allocation5 + $0xc8] sm:$0xff]
    %v71 = vld [vmem:[#allocation5 + $0xd0] sm:$0xff]
    %v72 = vld [vmem:[#allocation5 + $0xd8] sm:$0xff]
    %v73 = vld [vmem:[#allocation5 + $0xe0] sm:$0xff]
    %v74 = vld [vmem:[#allocation5 + $0xe8] sm:$0xff]
    %v75 = vld [vmem:[#allocation5 + $0xf0] sm:$0xff]
    %v76 = vld [vmem:[#allocation5 + $0xf8] sm:$0xff]
    %v77 = vld [vmem:[#allocation5 + $0x100] sm:$0xff]
    %v78 = vld [vmem:[#allocation5 + $0x108] sm:$0xff]
    %v79 = vld [vmem:[#allocation5 + $0x110] sm:$0xff]
    %v80 = vld [vmem:[#allocation5 + $0x118] sm:$0xff]
    %v81 = vld [vmem:[#allocation5 + $0x120] sm:$0x1]
    %v82 = vld [vmem:[#allocation5 + $0x121] sm:$0x1]
    %v83 = vld [vmem:[#allocation5 + $0x122] sm:$0x1]
    %v84 = vld [vmem:[#allocation5 + $0x123] sm:$0x1]
    %v85 = vld [vmem:[#allocation5 + $0x124] sm:$0x1]
    %v86 = vld [vmem:[#allocation5 + $0x125] sm:$0x1]
    %v87 = vld [vmem:[#allocation5 + $0x126] sm:$0x1]
    %v88 = vld [vmem:[#allocation5 + $0x127] sm:$0x1]
    %v89 = vlaneseq
    %v90 = vshrl.u32 %v89, 7
    %v91 = vsub.s32 0, %v90
    %v92 = vrot.slane %v81, %v91
    %vm93 = vcmask 261120
    %v95 = vsel %vm93, %v43, 0
    %v98 = vsel %vm93, %v44, 0
    %100 = vmatprep.subr.mxu0 0.0
    %101 = vmatpush1.msra.mxu0 %v45
    %102 = vmatprep.subr.mxu0 0.0
    %103 = vmatpush1.msra.mxu0 %v46
    %104 = vmatprep.subr.mxu0 0.0
    %105 = vmatpush1.msra.mxu0 %v47
    %106 = vmatprep.subr.mxu0 0.0
    %107 = vmatpush1.msra.mxu0 %v48
    %108 = vmatprep.subr.mxu0 0.0
    %109 = vmatpush1.msra.mxu0 0.0
    %110 = vmatprep.subr.mxu0 0.0
    %111 = vmatpush1.msra.mxu0 0.0
    %112 = vmatprep.subr.mxu0 0.0
    %113 = vmatpush1.msra.mxu0 0.0
    %114 = vmatprep.subr.mxu0 0.0
    %115 = vmatpush1.msra.mxu0 0.0
    %116 = vmatprep.subr.mxu0 0.0
    %117 = vmatpush1.msra.mxu0 0.0
    %118 = vmatprep.subr.mxu0 0.0
    %119 = vmatpush1.msra.mxu0 0.0
    %120 = vmatprep.subr.mxu0 0.0
    %121 = vmatpush1.msra.mxu0 0.0
    %122 = vmatprep.subr.mxu0 0.0
    %123 = vmatpush1.msra.mxu0 0.0
    %124 = vmatprep.subr.mxu0 0.0
    %125 = vmatpush1.msra.mxu0 0.0
    %126 = vmatprep.subr.mxu0 0.0
    %127 = vmatpush1.msra.mxu0 0.0
    %128 = vmatprep.subr.mxu0 0.0
    %129 = vmatpush1.msra.mxu0 0.0
    %130 = vmatprep.subr.mxu0 0.0
    %131 = vmatpush1.msra.mxu0 0.0
    %132 = vmatprep.subr.mxu0 0.0
    %133 = vmatpush1.msra.mxu0 0.0
    %134 = vmatprep.subr.mxu0 0.0
    %135 = vmatpush1.msra.mxu0 0.0
    %136 = vmatprep.subr.mxu0 0.0
    %137 = vmatpush1.msra.mxu0 0.0
    %138 = vmatprep.subr.mxu0 0.0
    %139 = vmatpush1.msra.mxu0 0.0
    %140 = vmatprep.subr.mxu0 0.0
    %141 = vmatpush1.msra.mxu0 0.0
    %142 = vmatprep.subr.mxu0 0.0
    %143 = vmatpush1.msra.mxu0 0.0
    %144 = vmatprep.subr.mxu0 0.0
    %145 = vmatpush1.msra.mxu0 0.0
    %146 = vmatprep.subr.mxu0 0.0
    %147 = vmatpush1.msra.mxu0 0.0
    %148 = vmatprep.subr.mxu0 0.0
    %149 = vmatpush1.msra.mxu0 0.0
    %150 = vmatprep.subr.mxu0 0.0
    %151 = vmatpush1.msra.mxu0 0.0
    %152 = vmatprep.subr.mxu0 0.0
    %153 = vmatpush1.msra.mxu0 0.0
    %154 = vmatprep.subr.mxu0 0.0
    %155 = vmatpush1.msra.mxu0 0.0
    %156 = vmatprep.subr.mxu0 0.0
    %157 = vmatpush1.msra.mxu0 0.0
    %158 = vmatprep.subr.mxu0 0.0
    %159 = vmatpush1.msra.mxu0 0.0
    %160 = vmatprep.subr.mxu0 0.0
    %161 = vmatpush1.msra.mxu0 0.0
    %162 = vmatprep.subr.mxu0 0.0
    %163 = vmatpush1.msra.mxu0 0.0
    %164 = vmatprep.mubr.f32.mxu0 0.0
    %165 = vmatmul.mubr.f32.gmra.mrb[0].mxu0 %v95
    %v166 = vpop.f32.mrb[0].mxu0
    %v167 = vadd.f32 %v92, %v166
    %v168 = vpop.f32.mrb[0].mxu0
    %169 = vmatprep.mubr.f32.mxu0 0.0
    %170 = vmatmul.mubr.f32.gmra.mrb[0].mxu0 %v98
    %v171 = vpop.f32.mrb[0].mxu0
    %v172 = vadd.f32 %v92, %v171
    %v173 = vpop.f32.mrb[0].mxu0
    %174 = vdwg.mxu0
    %v175 = vmul.f32 %v167, %v65
    %v176 = vmul.f32 %v172, %v66
    %v177 = vmul.f32 %v167, %v67
    %v178 = vmul.f32 %v172, %v68
    %v179 = vmul.f32 %v167, %v69
    %v180 = vmul.f32 %v172, %v70
    %v181 = vmul.f32 %v167, %v71
    %v182 = vmul.f32 %v172, %v72
    %v183 = vld [vmem:[%s1] sm:$0x1]
    %vm184 = vcmp.gt.s32.totalorder %v183, 0
    %v185 = vsel %vm184, 0.0, -1e+30
    %188 = vrot.lane.b32.xlu0 %v167, 96
    %v189 = vpop.permute.xlu0 %188
    %190 = vrot.lane.b32.xlu0 %v172, 96
    %v191 = vpop.permute.xlu0 %190
    %v193 = vsel %vm93, %v175, 0
    %v196 = vsel %vm93, %v176, 0
    %v199 = vsel %vm93, %v177, 0
    %v202 = vsel %vm93, %v178, 0
    %v205 = vsel %vm93, %v179, 0
    %v208 = vsel %vm93, %v180, 0
    %v211 = vsel %vm93, %v181, 0
    %v214 = vsel %vm93, %v182, 0
    %v216 = vsel %vm93, %v189, 0
    %v218 = vsel %vm93, %v191, 0
    %220 = vmatprep.subr.mxu0 0.0
    %221 = vmatpush1.xpose.msra.mxu0 %v216
    %222 = vmatprep.subr.mxu0 0.0
    %223 = vmatpush1.xpose.msra.mxu0 %v218
    %224 = vmatprep.subr.mxu0 0.0
    %225 = vmatpush1.xpose.msra.mxu0 0.0
    %226 = vmatprep.subr.mxu0 0.0
    %227 = vmatpush1.xpose.msra.mxu0 0.0
    %228 = vmatprep.subr.mxu0 0.0
    %229 = vmatpush1.xpose.msra.mxu0 0.0
    %230 = vmatprep.subr.mxu0 0.0
    %231 = vmatpush1.xpose.msra.mxu0 0.0
    %232 = vmatprep.subr.mxu0 0.0
    %233 = vmatpush1.xpose.msra.mxu0 0.0
    %234 = vmatprep.subr.mxu0 0.0
    %235 = vmatpush1.xpose.msra.mxu0 0.0
    %236 = vmatprep.subr.mxu0 0.0
    %237 = vmatpush1.xpose.msra.mxu0 0.0
    %238 = vmatprep.subr.mxu0 0.0
    %239 = vmatpush1.xpose.msra.mxu0 0.0
    %240 = vmatprep.subr.mxu0 0.0
    %241 = vmatpush1.xpose.msra.mxu0 0.0
    %242 = vmatprep.subr.mxu0 0.0
    %243 = vmatpush1.xpose.msra.mxu0 0.0
    %244 = vmatprep.subr.mxu0 0.0
    %245 = vmatpush1.xpose.msra.mxu0 0.0
    %246 = vmatprep.subr.mxu0 0.0
    %247 = vmatpush1.xpose.msra.mxu0 0.0
    %248 = vmatprep.subr.mxu0 0.0
    %249 = vmatpush1.xpose.msra.mxu0 0.0
    %250 = vmatprep.subr.mxu0 0.0
    %251 = vmatpush1.xpose.msra.mxu0 0.0
    %252 = vmatprep.subr.mxu0 0.0
    %253 = vmatpush1.xpose.msra.mxu0 0.0
    %254 = vmatprep.subr.mxu0 0.0
    %255 = vmatpush1.xpose.msra.mxu0 0.0
    %256 = vmatprep.subr.mxu0 0.0
    %257 = vmatpush1.xpose.msra.mxu0 0.0
    %258 = vmatprep.subr.mxu0 0.0
    %259 = vmatpush1.xpose.msra.mxu0 0.0
    %260 = vmatprep.subr.mxu0 0.0
    %261 = vmatpush1.xpose.msra.mxu0 0.0
    %262 = vmatprep.subr.mxu0 0.0
    %263 = vmatpush1.xpose.msra.mxu0 0.0
    %264 = vmatprep.subr.mxu0 0.0
    %265 = vmatpush1.xpose.msra.mxu0 0.0
    %266 = vmatprep.subr.mxu0 0.0
    %267 = vmatpush1.xpose.msra.mxu0 0.0
    %268 = vmatprep.subr.mxu0 0.0
    %269 = vmatpush1.xpose.msra.mxu0 0.0
    %270 = vmatprep.subr.mxu0 0.0
    %271 = vmatpush1.xpose.msra.mxu0 0.0
    %272 = vmatprep.subr.mxu0 0.0
    %273 = vmatpush1.xpose.msra.mxu0 0.0
    %274 = vmatprep.subr.mxu0 0.0
    %275 = vmatpush1.xpose.msra.mxu0 0.0
    %276 = vmatprep.subr.mxu0 0.0
    %277 = vmatpush1.xpose.msra.mxu0 0.0
    %278 = vmatprep.subr.mxu0 0.0
    %279 = vmatpush1.xpose.msra.mxu0 0.0
    %280 = vmatprep.subr.mxu0 0.0
    %281 = vmatpush1.xpose.msra.mxu0 0.0
    %282 = vmatprep.subr.mxu0 0.0
    %283 = vmatpush1.xpose.msra.mxu0 0.0
    %284 = vmatprep.mubr.f32.mxu0 0.0
    %285 = vmatmul.mubr.f32.gmra.mrb[0].mxu0 %v193
    %v286 = vpop.f32.mrb[0].mxu0
    %v287 = vadd.f32 %v73, %v286
    %v288 = vpop.f32.mrb[0].mxu0
    %289 = vmatprep.mubr.f32.mxu0 0.0
    %290 = vmatmul.mubr.f32.gmra.mrb[0].mxu0 %v196
    %v291 = vpop.f32.mrb[0].mxu0
    %v292 = vadd.f32 %v74, %v291
    %v293 = vpop.f32.mrb[0].mxu0
    %294 = vmatprep.mubr.f32.mxu0 0.0
    %295 = vmatmul.mubr.f32.gmra.mrb[0].mxu0 %v199
    %v296 = vpop.f32.mrb[0].mxu0
    %v297 = vadd.f32 %v75, %v296
    %v298 = vpop.f32.mrb[0].mxu0
    %299 = vmatprep.mubr.f32.mxu0 0.0
    %300 = vmatmul.mubr.f32.gmra.mrb[0].mxu0 %v202
    %v301 = vpop.f32.mrb[0].mxu0
    %v302 = vadd.f32 %v76, %v301
    %v303 = vpop.f32.mrb[0].mxu0
    %304 = vmatprep.mubr.f32.mxu0 0.0
    %305 = vmatmul.mubr.f32.gmra.mrb[0].mxu0 %v205
    %v306 = vpop.f32.mrb[0].mxu0
    %v307 = vadd.f32 %v77, %v306
    %v308 = vpop.f32.mrb[0].mxu0
    %309 = vmatprep.mubr.f32.mxu0 0.0
    %310 = vmatmul.mubr.f32.gmra.mrb[0].mxu0 %v208
    %v311 = vpop.f32.mrb[0].mxu0
    %v312 = vadd.f32 %v78, %v311
    %v313 = vpop.f32.mrb[0].mxu0
    %314 = vmatprep.mubr.f32.mxu0 0.0
    %315 = vmatmul.mubr.f32.gmra.mrb[0].mxu0 %v211
    %v316 = vpop.f32.mrb[0].mxu0
    %v317 = vadd.f32 %v79, %v316
    %v318 = vpop.f32.mrb[0].mxu0
    %319 = vmatprep.mubr.f32.mxu0 0.0
    %320 = vmatmul.mubr.f32.gmra.mrb[0].mxu0 %v214
    %v321 = vpop.f32.mrb[0].mxu0
    %v322 = vadd.f32 %v80, %v321
    %v323 = vpop.f32.mrb[0].mxu0
    %324 = vdwg.mxu0
    %v326 = vlaneseq
    %v327 = vshrl.u32 %v326, 7
    %v328 = vsub.s32 0, %v327
    %v329 = vrot.slane %v185, %v328
    %v331 = vadd.f32 %v287, %v329
    %v332 = vadd.f32 %v292, %v329
    %v333 = vadd.f32 %v297, %v329
    %v334 = vadd.f32 %v302, %v329
    %v335 = vadd.f32 %v307, %v329
    %v336 = vadd.f32 %v312, %v329
    %v337 = vadd.f32 %v317, %v329
    %v338 = vadd.f32 %v322, %v329
    %vm339 = vcmask 130048
    %v340 = vsel %vm339, %v331, -inf
    %341 = vmax.xlane.f32.xlu0 %v340
    %v342 = vpop.xlane.xlu0 %341
    %v343 = vsel %vm339, %v332, -inf
    %344 = vmax.xlane.f32.xlu0 %v343
    %v345 = vpop.xlane.xlu0 %344
    %v346 = vsel %vm339, %v333, -inf
    %347 = vmax.xlane.f32.xlu0 %v346
    %v348 = vpop.xlane.xlu0 %347
    %v349 = vsel %vm339, %v334, -inf
    %350 = vmax.xlane.f32.xlu0 %v349
    %v351 = vpop.xlane.xlu0 %350
    %v352 = vsel %vm339, %v335, -inf
    %353 = vmax.xlane.f32.xlu0 %v352
    %v354 = vpop.xlane.xlu0 %353
    %v355 = vsel %vm339, %v336, -inf
    %356 = vmax.xlane.f32.xlu0 %v355
    %v357 = vpop.xlane.xlu0 %356
    %v358 = vsel %vm339, %v337, -inf
    %359 = vmax.xlane.f32.xlu0 %v358
    %v360 = vpop.xlane.xlu0 %359
    %v361 = vsel %vm339, %v338, -inf
    %362 = vmax.xlane.f32.xlu0 %v361
    %v363 = vpop.xlane.xlu0 %362
    %v364 = vsub.f32 %v331, %v342
    %v365 = vsub.f32 %v332, %v345
    %v366 = vsub.f32 %v333, %v348
    %v367 = vsub.f32 %v334, %v351
    %v368 = vsub.f32 %v335, %v354
    %v369 = vsub.f32 %v336, %v357
    %v370 = vsub.f32 %v337, %v360
    %v371 = vsub.f32 %v338, %v363
    %v372 = vmul.f32 %v364, 1.442695
    %v373 = vpow.pop %v372
    %v374 = vmul.f32 %v365, 1.442695
    %v375 = vpow.pop %v374
    %v376 = vmul.f32 %v366, 1.442695
    %v377 = vpow.pop %v376
    %v378 = vmul.f32 %v367, 1.442695
    %v379 = vpow.pop %v378
    %v380 = vmul.f32 %v368, 1.442695
    %v381 = vpow.pop %v380
    %v382 = vmul.f32 %v369, 1.442695
    %v383 = vpow.pop %v382
    %v384 = vmul.f32 %v370, 1.442695
    %v385 = vpow.pop %v384
    %v386 = vmul.f32 %v371, 1.442695
    %v387 = vpow.pop %v386
    %v388 = vsel %vm339, %v373, 0.0
    %389 = vadd.xlane.f32.xlu0 %v388
    %v390 = vpop.xlane.xlu0 %389
    %v391 = vsel %vm339, %v375, 0.0
    %392 = vadd.xlane.f32.xlu0 %v391
    %v393 = vpop.xlane.xlu0 %392
    %v394 = vsel %vm339, %v377, 0.0
    %395 = vadd.xlane.f32.xlu0 %v394
    %v396 = vpop.xlane.xlu0 %395
    %v397 = vsel %vm339, %v379, 0.0
    %398 = vadd.xlane.f32.xlu0 %v397
    %v399 = vpop.xlane.xlu0 %398
    %v400 = vsel %vm339, %v381, 0.0
    %401 = vadd.xlane.f32.xlu0 %v400
    %v402 = vpop.xlane.xlu0 %401
    %v403 = vsel %vm339, %v383, 0.0
    %404 = vadd.xlane.f32.xlu0 %v403
    %v405 = vpop.xlane.xlu0 %404
    %v406 = vsel %vm339, %v385, 0.0
    %407 = vadd.xlane.f32.xlu0 %v406
    %v408 = vpop.xlane.xlu0 %407
    %v409 = vsel %vm339, %v387, 0.0
    %410 = vadd.xlane.f32.xlu0 %v409
    %v411 = vpop.xlane.xlu0 %410
    %v412 = vrcp.pop %v390
    %v413 = vrcp.pop %v393
    %v414 = vrcp.pop %v396
    %v415 = vrcp.pop %v399
    %v416 = vrcp.pop %v402
    %v417 = vrcp.pop %v405
    %v418 = vrcp.pop %v408
    %v419 = vrcp.pop %v411
    %v420 = vmul.f32 %v373, %v412
    %v421 = vmul.f32 %v375, %v413
    %v422 = vmul.f32 %v377, %v414
    %v423 = vmul.f32 %v379, %v415
    %v424 = vmul.f32 %v381, %v416
    %v425 = vmul.f32 %v383, %v417
    %v426 = vmul.f32 %v385, %v418
    %v427 = vmul.f32 %v387, %v419
    %428 = vrot.lane.b32.xlu0 %v167, 64
    %v429 = vpop.permute.xlu0 %428
    %430 = vrot.lane.b32.xlu0 %v172, 64
    %v431 = vpop.permute.xlu0 %430
    %v435 = vsel %vm339, %v420, 0
    %v438 = vsel %vm339, %v421, 0
    %v441 = vsel %vm339, %v422, 0
    %v444 = vsel %vm339, %v423, 0
    %v447 = vsel %vm339, %v424, 0
    %v450 = vsel %vm339, %v425, 0
    %v453 = vsel %vm339, %v426, 0
    %v456 = vsel %vm339, %v427, 0
    %458 = vmatprep.subr.mxu0 0.0
    %459 = vmatpush1.msra.mxu0 %v429
    %460 = vmatprep.subr.mxu0 0.0
    %461 = vmatpush1.msra.mxu0 %v431
    %462 = vmatprep.subr.mxu0 0.0
    %463 = vmatpush1.msra.mxu0 0.0
    %464 = vmatprep.subr.mxu0 0.0
    %465 = vmatpush1.msra.mxu0 0.0
    %466 = vmatprep.subr.mxu0 0.0
    %467 = vmatpush1.msra.mxu0 0.0
    %468 = vmatprep.subr.mxu0 0.0
    %469 = vmatpush1.msra.mxu0 0.0
    %470 = vmatprep.subr.mxu0 0.0
    %471 = vmatpush1.msra.mxu0 0.0
    %472 = vmatprep.subr.mxu0 0.0
    %473 = vmatpush1.msra.mxu0 0.0
    %474 = vmatprep.subr.mxu0 0.0
    %475 = vmatpush1.msra.mxu0 0.0
    %476 = vmatprep.subr.mxu0 0.0
    %477 = vmatpush1.msra.mxu0 0.0
    %478 = vmatprep.subr.mxu0 0.0
    %479 = vmatpush1.msra.mxu0 0.0
    %480 = vmatprep.subr.mxu0 0.0
    %481 = vmatpush1.msra.mxu0 0.0
    %482 = vmatprep.subr.mxu0 0.0
    %483 = vmatpush1.msra.mxu0 0.0
    %484 = vmatprep.subr.mxu0 0.0
    %485 = vmatpush1.msra.mxu0 0.0
    %486 = vmatprep.subr.mxu0 0.0
    %487 = vmatpush1.msra.mxu0 0.0
    %488 = vmatprep.subr.mxu0 0.0
    %489 = vmatpush1.msra.mxu0 0.0
    %490 = vmatprep.subr.mxu0 0.0
    %491 = vmatpush1.msra.mxu0 0.0
    %492 = vmatprep.subr.mxu0 0.0
    %493 = vmatpush1.msra.mxu0 0.0
    %494 = vmatprep.subr.mxu0 0.0
    %495 = vmatpush1.msra.mxu0 0.0
    %496 = vmatprep.subr.mxu0 0.0
    %497 = vmatpush1.msra.mxu0 0.0
    %498 = vmatprep.subr.mxu0 0.0
    %499 = vmatpush1.msra.mxu0 0.0
    %500 = vmatprep.subr.mxu0 0.0
    %501 = vmatpush1.msra.mxu0 0.0
    %502 = vmatprep.subr.mxu0 0.0
    %503 = vmatpush1.msra.mxu0 0.0
    %504 = vmatprep.subr.mxu0 0.0
    %505 = vmatpush1.msra.mxu0 0.0
    %506 = vmatprep.subr.mxu0 0.0
    %507 = vmatpush1.msra.mxu0 0.0
    %508 = vmatprep.subr.mxu0 0.0
    %509 = vmatpush1.msra.mxu0 0.0
    %510 = vmatprep.subr.mxu0 0.0
    %511 = vmatpush1.msra.mxu0 0.0
    %512 = vmatprep.subr.mxu0 0.0
    %513 = vmatpush1.msra.mxu0 0.0
    %514 = vmatprep.subr.mxu0 0.0
    %515 = vmatpush1.msra.mxu0 0.0
    %516 = vmatprep.subr.mxu0 0.0
    %517 = vmatpush1.msra.mxu0 0.0
    %518 = vmatprep.subr.mxu0 0.0
    %519 = vmatpush1.msra.mxu0 0.0
    %520 = vmatprep.subr.mxu0 0.0
    %521 = vmatpush1.msra.mxu0 0.0
    %522 = vmatprep.mubr.f32.mxu0 0.0
    %523 = vmatmul.mubr.f32.gmra.mrb[0].mxu0 %v435
    %v524 = vpop.f32.mrb[0].mxu0
    %v525 = vadd.f32 0.0, %v524
    %v526 = vpop.f32.mrb[0].mxu0
    %527 = vmatprep.mubr.f32.mxu0 0.0
    %528 = vmatmul.mubr.f32.gmra.mrb[0].mxu0 %v438
    %v529 = vpop.f32.mrb[0].mxu0
    %v530 = vadd.f32 0.0, %v529
    %v531 = vpop.f32.mrb[0].mxu0
    %532 = vmatprep.mubr.f32.mxu0 0.0
    %533 = vmatmul.mubr.f32.gmra.mrb[0].mxu0 %v441
    %v534 = vpop.f32.mrb[0].mxu0
    %v535 = vadd.f32 0.0, %v534
    %v536 = vpop.f32.mrb[0].mxu0
    %537 = vmatprep.mubr.f32.mxu0 0.0
    %538 = vmatmul.mubr.f32.gmra.mrb[0].mxu0 %v444
    %v539 = vpop.f32.mrb[0].mxu0
    %v540 = vadd.f32 0.0, %v539
    %v541 = vpop.f32.mrb[0].mxu0
    %542 = vmatprep.mubr.f32.mxu0 0.0
    %543 = vmatmul.mubr.f32.gmra.mrb[0].mxu0 %v447
    %v544 = vpop.f32.mrb[0].mxu0
    %v545 = vadd.f32 0.0, %v544
    %v546 = vpop.f32.mrb[0].mxu0
    %547 = vmatprep.mubr.f32.mxu0 0.0
    %548 = vmatmul.mubr.f32.gmra.mrb[0].mxu0 %v450
    %v549 = vpop.f32.mrb[0].mxu0
    %v550 = vadd.f32 0.0, %v549
    %v551 = vpop.f32.mrb[0].mxu0
    %552 = vmatprep.mubr.f32.mxu0 0.0
    %553 = vmatmul.mubr.f32.gmra.mrb[0].mxu0 %v453
    %v554 = vpop.f32.mrb[0].mxu0
    %v555 = vadd.f32 0.0, %v554
    %v556 = vpop.f32.mrb[0].mxu0
    %557 = vmatprep.mubr.f32.mxu0 0.0
    %558 = vmatmul.mubr.f32.gmra.mrb[0].mxu0 %v456
    %v559 = vpop.f32.mrb[0].mxu0
    %v560 = vadd.f32 0.0, %v559
    %v561 = vpop.f32.mrb[0].mxu0
    %562 = vdwg.mxu0
    %v563 = vmul.f32 %v525, %v65
    %v564 = vmul.f32 %v530, %v66
    %v565 = vmul.f32 %v535, %v67
    %v566 = vmul.f32 %v540, %v68
    %v567 = vmul.f32 %v545, %v69
    %v568 = vmul.f32 %v550, %v70
    %v569 = vmul.f32 %v555, %v71
    %v570 = vmul.f32 %v560, %v72
    %v571 = vadd.f32 %v563, %v565
    %v572 = vadd.f32 %v564, %v566
    %v573 = vadd.f32 %v571, %v567
    %v574 = vadd.f32 %v572, %v568
    %v575 = vadd.f32 %v573, %v569
    %v576 = vadd.f32 %v574, %v570
    %v577 = vlaneseq
    %v578 = vshrl.u32 %v577, 7
    %v579 = vsub.s32 0, %v578
    %v580 = vrot.slane %v83, %v579
    %v582 = vsel %vm93, %v575, 0
    %v585 = vsel %vm93, %v576, 0
    %587 = vmatprep.subr.mxu0 0.0
    %588 = vmatpush1.msra.mxu0 %v61
    %589 = vmatprep.subr.mxu0 0.0
    %590 = vmatpush1.msra.mxu0 %v62
    %591 = vmatprep.subr.mxu0 0.0
    %592 = vmatpush1.msra.mxu0 %v63
    %593 = vmatprep.subr.mxu0 0.0
    %594 = vmatpush1.msra.mxu0 %v64
    %595 = vmatprep.subr.mxu0 0.0
    %596 = vmatpush1.msra.mxu0 0.0
    %597 = vmatprep.subr.mxu0 0.0
    %598 = vmatpush1.msra.mxu0 0.0
    %599 = vmatprep.subr.mxu0 0.0
    %600 = vmatpush1.msra.mxu0 0.0
    %601 = vmatprep.subr.mxu0 0.0
    %602 = vmatpush1.msra.mxu0 0.0
    %603 = vmatprep.subr.mxu0 0.0
    %604 = vmatpush1.msra.mxu0 0.0
    %605 = vmatprep.subr.mxu0 0.0
    %606 = vmatpush1.msra.mxu0 0.0
    %607 = vmatprep.subr.mxu0 0.0
    %608 = vmatpush1.msra.mxu0 0.0
    %609 = vmatprep.subr.mxu0 0.0
    %610 = vmatpush1.msra.mxu0 0.0
    %611 = vmatprep.subr.mxu0 0.0
    %612 = vmatpush1.msra.mxu0 0.0
    %613 = vmatprep.subr.mxu0 0.0
    %614 = vmatpush1.msra.mxu0 0.0
    %615 = vmatprep.subr.mxu0 0.0
    %616 = vmatpush1.msra.mxu0 0.0
    %617 = vmatprep.subr.mxu0 0.0
    %618 = vmatpush1.msra.mxu0 0.0
    %619 = vmatprep.subr.mxu0 0.0
    %620 = vmatpush1.msra.mxu0 0.0
    %621 = vmatprep.subr.mxu0 0.0
    %622 = vmatpush1.msra.mxu0 0.0
    %623 = vmatprep.subr.mxu0 0.0
    %624 = vmatpush1.msra.mxu0 0.0
    %625 = vmatprep.subr.mxu0 0.0
    %626 = vmatpush1.msra.mxu0 0.0
    %627 = vmatprep.subr.mxu0 0.0
    %628 = vmatpush1.msra.mxu0 0.0
    %629 = vmatprep.subr.mxu0 0.0
    %630 = vmatpush1.msra.mxu0 0.0
    %631 = vmatprep.subr.mxu0 0.0
    %632 = vmatpush1.msra.mxu0 0.0
    %633 = vmatprep.subr.mxu0 0.0
    %634 = vmatpush1.msra.mxu0 0.0
    %635 = vmatprep.subr.mxu0 0.0
    %636 = vmatpush1.msra.mxu0 0.0
    %637 = vmatprep.subr.mxu0 0.0
    %638 = vmatpush1.msra.mxu0 0.0
    %639 = vmatprep.subr.mxu0 0.0
    %640 = vmatpush1.msra.mxu0 0.0
    %641 = vmatprep.subr.mxu0 0.0
    %642 = vmatpush1.msra.mxu0 0.0
    %643 = vmatprep.subr.mxu0 0.0
    %644 = vmatpush1.msra.mxu0 0.0
    %645 = vmatprep.subr.mxu0 0.0
    %646 = vmatpush1.msra.mxu0 0.0
    %647 = vmatprep.subr.mxu0 0.0
    %648 = vmatpush1.msra.mxu0 0.0
    %649 = vmatprep.subr.mxu0 0.0
    %650 = vmatpush1.msra.mxu0 0.0
    %651 = vmatprep.mubr.f32.mxu0 0.0
    %652 = vmatmul.mubr.f32.gmra.mrb[0].mxu0 %v582
    %v653 = vpop.f32.mrb[0].mxu0
    %v654 = vadd.f32 %v580, %v653
    %v655 = vpop.f32.mrb[0].mxu0
    %656 = vmatprep.mubr.f32.mxu0 0.0
    %657 = vmatmul.mubr.f32.gmra.mrb[0].mxu0 %v585
    %v658 = vpop.f32.mrb[0].mxu0
    %v659 = vadd.f32 %v580, %v658
    %v660 = vpop.f32.mrb[0].mxu0
    %661 = vdwg.mxu0
    %v662 = vadd.f32 %v43, %v654
    %v663 = vadd.f32 %v44, %v659
    %v664 = vsel %vm93, %v662, 0.0
    %665 = vadd.xlane.f32.xlu0 %v664
    %v666 = vpop.xlane.xlu0 %665
    %v667 = vsel %vm93, %v663, 0.0
    %668 = vadd.xlane.f32.xlu0 %v667
    %v669 = vpop.xlane.xlu0 %668
    %v670 = vrcp.pop 32.0
    %v671 = vmul.f32 %v666, %v670
    %v672 = vmul.f32 %v669, %v670
    %v673 = vsub.f32 %v662, %v671
    %v674 = vsub.f32 %v663, %v672
    %v675 = vmul.f32 %v673, %v673
    %v676 = vmul.f32 %v674, %v674
    %v677 = vsel %vm93, %v675, 0.0
    %678 = vadd.xlane.f32.xlu0 %v677
    %v679 = vpop.xlane.xlu0 %678
    %v680 = vsel %vm93, %v676, 0.0
    %681 = vadd.xlane.f32.xlu0 %v680
    %v682 = vpop.xlane.xlu0 %681
    %v683 = vmul.f32 %v679, %v670
    %v684 = vmul.f32 %v682, %v670
    %v685 = vadd.f32 %v683, 1e-05
    %v686 = vadd.f32 %v684, 1e-05
    %v687 = vrsqrt.pop %v685
    %v688 = vrsqrt.pop %v686
    %v689 = vmul.f32 %v673, %v687
    %v690 = vmul.f32 %v674, %v688
    %v691 = vlaneseq
    %v692 = vshrl.u32 %v691, 7
    %v693 = vsub.s32 0, %v692
    %v694 = vrot.slane %v85, %v693
    %v695 = vmul.f32 %v689, %v694
    %v696 = vmul.f32 %v690, %v694
    %v697 = vlaneseq
    %v698 = vshrl.u32 %v697, 7
    %v699 = vsub.s32 0, %v698
    %v700 = vrot.slane %v86, %v699
    %v701 = vadd.f32 %v695, %v700
    %v702 = vadd.f32 %v696, %v700
    %v703 = vlaneseq
    %v704 = vshrl.u32 %v703, 7
    %v705 = vsub.s32 0, %v704
    %v706 = vrot.slane %v82, %v705
    %v708 = vsel %vm93, %v701, 0
    %v711 = vsel %vm93, %v702, 0
    %713 = vmatprep.subr.mxu0 0.0
    %714 = vmatpush1.msra.mxu0 %v49
    %715 = vmatprep.subr.mxu0 0.0
    %716 = vmatpush1.msra.mxu0 %v50
    %717 = vmatprep.subr.mxu0 0.0
    %718 = vmatpush1.msra.mxu0 %v51
    %719 = vmatprep.subr.mxu0 0.0
    %720 = vmatpush1.msra.mxu0 %v52
    %721 = vmatprep.subr.mxu0 0.0
    %722 = vmatpush1.msra.mxu0 0.0
    %723 = vmatprep.subr.mxu0 0.0
    %724 = vmatpush1.msra.mxu0 0.0
    %725 = vmatprep.subr.mxu0 0.0
    %726 = vmatpush1.msra.mxu0 0.0
    %727 = vmatprep.subr.mxu0 0.0
    %728 = vmatpush1.msra.mxu0 0.0
    %729 = vmatprep.subr.mxu0 0.0
    %730 = vmatpush1.msra.mxu0 0.0
    %731 = vmatprep.subr.mxu0 0.0
    %732 = vmatpush1.msra.mxu0 0.0
    %733 = vmatprep.subr.mxu0 0.0
    %734 = vmatpush1.msra.mxu0 0.0
    %735 = vmatprep.subr.mxu0 0.0
    %736 = vmatpush1.msra.mxu0 0.0
    %737 = vmatprep.subr.mxu0 0.0
    %738 = vmatpush1.msra.mxu0 0.0
    %739 = vmatprep.subr.mxu0 0.0
    %740 = vmatpush1.msra.mxu0 0.0
    %741 = vmatprep.subr.mxu0 0.0
    %742 = vmatpush1.msra.mxu0 0.0
    %743 = vmatprep.subr.mxu0 0.0
    %744 = vmatpush1.msra.mxu0 0.0
    %745 = vmatprep.subr.mxu0 0.0
    %746 = vmatpush1.msra.mxu0 0.0
    %747 = vmatprep.subr.mxu0 0.0
    %748 = vmatpush1.msra.mxu0 0.0
    %749 = vmatprep.subr.mxu0 0.0
    %750 = vmatpush1.msra.mxu0 0.0
    %751 = vmatprep.subr.mxu0 0.0
    %752 = vmatpush1.msra.mxu0 0.0
    %753 = vmatprep.subr.mxu0 0.0
    %754 = vmatpush1.msra.mxu0 0.0
    %755 = vmatprep.subr.mxu0 0.0
    %756 = vmatpush1.msra.mxu0 0.0
    %757 = vmatprep.subr.mxu0 0.0
    %758 = vmatpush1.msra.mxu0 0.0
    %759 = vmatprep.subr.mxu0 0.0
    %760 = vmatpush1.msra.mxu0 0.0
    %761 = vmatprep.subr.mxu0 0.0
    %762 = vmatpush1.msra.mxu0 0.0
    %763 = vmatprep.subr.mxu0 0.0
    %764 = vmatpush1.msra.mxu0 0.0
    %765 = vmatprep.subr.mxu0 0.0
    %766 = vmatpush1.msra.mxu0 0.0
    %767 = vmatprep.subr.mxu0 0.0
    %768 = vmatpush1.msra.mxu0 0.0
    %769 = vmatprep.subr.mxu0 0.0
    %770 = vmatpush1.msra.mxu0 0.0
    %771 = vmatprep.subr.mxu0 0.0
    %772 = vmatpush1.msra.mxu0 0.0
    %773 = vmatprep.subr.mxu0 0.0
    %774 = vmatpush1.msra.mxu0 0.0
    %775 = vmatprep.subr.mxu0 0.0
    %776 = vmatpush1.msra.mxu0 0.0
    %777 = vmatprep.mubr.f32.mxu0 0.0
    %778 = vmatmul.mubr.f32.gmra.mrb[0].mxu0 %v708
    %v779 = vpop.f32.mrb[0].mxu0
    %v780 = vadd.f32 %v706, %v779
    %v781 = vpop.f32.mrb[0].mxu0
    %782 = vmatprep.mubr.f32.mxu0 0.0
    %783 = vmatmul.mubr.f32.gmra.mrb[0].mxu0 %v711
    %v784 = vpop.f32.mrb[0].mxu0
    %v785 = vadd.f32 %v706, %v784
    %v786 = vpop.f32.mrb[0].mxu0
    %787 = vdwg.mxu0
    %v788 = vmax.f32 %v780, 0.0
    %v789 = vmax.f32 %v785, 0.0
    %v790 = vlaneseq
    %v791 = vshrl.u32 %v790, 7
    %v792 = vsub.s32 0, %v791
    %v793 = vrot.slane %v84, %v792
    %vm794 = vcmask 523264
    %v796 = vsel %vm794, %v788, 0
    %v799 = vsel %vm794, %v789, 0
    %801 = vmatprep.subr.mxu0 0.0
    %802 = vmatpush1.msra.mxu0 %v53
    %803 = vmatprep.subr.mxu0 0.0
    %804 = vmatpush1.msra.mxu0 %v54
    %805 = vmatprep.subr.mxu0 0.0
    %806 = vmatpush1.msra.mxu0 %v55
    %807 = vmatprep.subr.mxu0 0.0
    %808 = vmatpush1.msra.mxu0 %v56
    %809 = vmatprep.subr.mxu0 0.0
    %810 = vmatpush1.msra.mxu0 %v57
    %811 = vmatprep.subr.mxu0 0.0
    %812 = vmatpush1.msra.mxu0 %v58
    %813 = vmatprep.subr.mxu0 0.0
    %814 = vmatpush1.msra.mxu0 %v59
    %815 = vmatprep.subr.mxu0 0.0
    %816 = vmatpush1.msra.mxu0 %v60
    %817 = vmatprep.subr.mxu0 0.0
    %818 = vmatpush1.msra.mxu0 0.0
    %819 = vmatprep.subr.mxu0 0.0
    %820 = vmatpush1.msra.mxu0 0.0
    %821 = vmatprep.subr.mxu0 0.0
    %822 = vmatpush1.msra.mxu0 0.0
    %823 = vmatprep.subr.mxu0 0.0
    %824 = vmatpush1.msra.mxu0 0.0
    %825 = vmatprep.subr.mxu0 0.0
    %826 = vmatpush1.msra.mxu0 0.0
    %827 = vmatprep.subr.mxu0 0.0
    %828 = vmatpush1.msra.mxu0 0.0
    %829 = vmatprep.subr.mxu0 0.0
    %830 = vmatpush1.msra.mxu0 0.0
    %831 = vmatprep.subr.mxu0 0.0
    %832 = vmatpush1.msra.mxu0 0.0
    %833 = vmatprep.subr.mxu0 0.0
    %834 = vmatpush1.msra.mxu0 0.0
    %835 = vmatprep.subr.mxu0 0.0
    %836 = vmatpush1.msra.mxu0 0.0
    %837 = vmatprep.subr.mxu0 0.0
    %838 = vmatpush1.msra.mxu0 0.0
    %839 = vmatprep.subr.mxu0 0.0
    %840 = vmatpush1.msra.mxu0 0.0
    %841 = vmatprep.subr.mxu0 0.0
    %842 = vmatpush1.msra.mxu0 0.0
    %843 = vmatprep.subr.mxu0 0.0
    %844 = vmatpush1.msra.mxu0 0.0
    %845 = vmatprep.subr.mxu0 0.0
    %846 = vmatpush1.msra.mxu0 0.0
    %847 = vmatprep.subr.mxu0 0.0
    %848 = vmatpush1.msra.mxu0 0.0
    %849 = vmatprep.subr.mxu0 0.0
    %850 = vmatpush1.msra.mxu0 0.0
    %851 = vmatprep.subr.mxu0 0.0
    %852 = vmatpush1.msra.mxu0 0.0
    %853 = vmatprep.subr.mxu0 0.0
    %854 = vmatpush1.msra.mxu0 0.0
    %855 = vmatprep.subr.mxu0 0.0
    %856 = vmatpush1.msra.mxu0 0.0
    %857 = vmatprep.subr.mxu0 0.0
    %858 = vmatpush1.msra.mxu0 0.0
    %859 = vmatprep.subr.mxu0 0.0
    %860 = vmatpush1.msra.mxu0 0.0
    %861 = vmatprep.subr.mxu0 0.0
    %862 = vmatpush1.msra.mxu0 0.0
    %863 = vmatprep.subr.mxu0 0.0
    %864 = vmatpush1.msra.mxu0 0.0
    %865 = vmatprep.mubr.f32.mxu0 0.0
    %866 = vmatmul.mubr.f32.gmra.mrb[0].mxu0 %v796
    %v867 = vpop.f32.mrb[0].mxu0
    %v868 = vadd.f32 %v793, %v867
    %v869 = vpop.f32.mrb[0].mxu0
    %870 = vmatprep.mubr.f32.mxu0 0.0
    %871 = vmatmul.mubr.f32.gmra.mrb[0].mxu0 %v799
    %v872 = vpop.f32.mrb[0].mxu0
    %v873 = vadd.f32 %v793, %v872
    %v874 = vpop.f32.mrb[0].mxu0
    %875 = vdwg.mxu0
    %v876 = vadd.f32 %v701, %v868
    %v877 = vadd.f32 %v702, %v873
    %v878 = vsel %vm93, %v876, 0.0
    %879 = vadd.xlane.f32.xlu0 %v878
    %v880 = vpop.xlane.xlu0 %879
    %v881 = vsel %vm93, %v877, 0.0
    %882 = vadd.xlane.f32.xlu0 %v881
    %v883 = vpop.xlane.xlu0 %882
    %v884 = vmul.f32 %v880, %v670
    %v885 = vmul.f32 %v883, %v670
    %v886 = vsub.f32 %v876, %v884
    %v887 = vsub.f32 %v877, %v885
    %v888 = vmul.f32 %v886, %v886
    %v889 = vmul.f32 %v887, %v887
    %v890 = vsel %vm93, %v888, 0.0
    %891 = vadd.xlane.f32.xlu0 %v890
    %v892 = vpop.xlane.xlu0 %891
    %v893 = vsel %vm93, %v889, 0.0
    %894 = vadd.xlane.f32.xlu0 %v893
    %v895 = vpop.xlane.xlu0 %894
    %v896 = vmul.f32 %v892, %v670
    %v897 = vmul.f32 %v895, %v670
    %v898 = vadd.f32 %v896, 1e-05
    %v899 = vadd.f32 %v897, 1e-05
    %v900 = vrsqrt.pop %v898
    %v901 = vrsqrt.pop %v899
    %v902 = vmul.f32 %v886, %v900
    %v903 = vmul.f32 %v887, %v901
    %v904 = vlaneseq
    %v905 = vshrl.u32 %v904, 7
    %v906 = vsub.s32 0, %v905
    %v907 = vrot.slane %v87, %v906
    %v908 = vmul.f32 %v902, %v907
    %v909 = vmul.f32 %v903, %v907
    %v910 = vlaneseq
    %v911 = vshrl.u32 %v910, 7
    %v912 = vsub.s32 0, %v911
    %v913 = vrot.slane %v88, %v912
    %v914 = vadd.f32 %v908, %v913
    %v915 = vadd.f32 %v909, %v913
    %916 = vst.msk [vmem:[#allocation7] sm:$0xff] %vm93, %v914
    %917 = vst.msk [vmem:[#allocation7 + $0x8] sm:$0xff] %vm93, %v915
    // Predicated region
    $region22: #{transformer_block.1} parent=1 // pred_check
      _
    $region23: #{transformer_block.1} parent=1 // pred_check_branch
      %919 = sbr.rel (0) target = $region25
    $region24: #{transformer_block.1} parent=1 // pred_region
      %s921 = ssub.s32 256, 256
      %922 = vsyncadd [#allocation4], %s921
      %s923 = sshll.u32 [#allocation7], 4
      %s924 = int_to_ptr.vmem [resolvable:$true] %s923
      %929 = dma.vmem_to_hbm [thread:$0]  %s924, 256, %s3, [#allocation4], 128, 128, 8
    $region25: #{transformer_block.1} parent=1 // pred_fallthru
      _
    // Predicated region
    $region26: #{transformer_block.1} parent=1 // pred_check
      _
    $region27: #{transformer_block.1} parent=1 // pred_check_branch
      %931 = sbr.rel (0) target = $region29
    $region28: #{transformer_block.1} parent=1 // pred_region
      %932 = dma.done [#allocation4], 256
    $region29: #{transformer_block.1} parent=1 // pred_fallthru
      _
    %933 = vsyncpa [#allocation3], 1
    %934 = vsyncpa [#allocation6], 1
    %935 = vsyncpa [#allocation4], 1

</llo_original>
